<compile_context>
chip_gen: v5e
topology: v5e:2x2
jax: 0.10.0
libtpu: 0.0.40
codegen_flags: <defaults>
</compile_context>

<pallas_src>
import functools

import jax
import jax.numpy as jnp
from jax.experimental import pallas as pl
from jax.experimental.pallas import tpu as pltpu


def _round_up(x, m):
    return (x + m - 1) // m * m


def vae_kernel(x_ref, eps_ref,
               w_e1, b_e1, w_e2, b_e2, w_h, b_h,
               w_d1, b_d1, w_d2, b_d2, w_d3, b_d3,
               u_ref, mean_ref, std_ref,
               *, latent_dim, leaky):
    """One batch tile of the fused VAE forward pass.

    Weights are bf16 (zero-padded per layer), biases/activations f32.
    """

    def act(h):
        if leaky:
            return jnp.where(h > 0.0, h, 0.01 * h)
        return jnp.maximum(h, 0.0)

    def dense(h, w, b):
        # bf16 x bf16 MXU push, f32 accumulation, f32 bias add.
        return jnp.dot(h.astype(jnp.bfloat16), w[...],
                       preferred_element_type=jnp.float32) + b[...]

    x = x_ref[...]                      # (TB, input_dim)  f32
    eps = eps_ref[...]                  # (TB, latent_dim) f32

    # ---- encoder ----
    h = act(dense(x, w_e1, b_e1))       # (TB, P_H)
    h = act(dense(h, w_e2, b_e2))       # (TB, P_H)

    # ---- fused mean / log_std head (single matmul) ----
    hm = dense(h, w_h, b_h)             # lanes [0:L)=mean, [L:2L)=log_std
    L = latent_dim
    mean = hm[:, 0:L]
    log_std = jnp.clip(hm[:, L:2 * L], -4.0, 15.0)
    std = jnp.exp(log_std)

    # ---- reparameterization (eps ~ N(0,1) supplied from the host) ----
    z = mean + std * eps                # (TB, L)

    # ---- decoder ----
    a = act(dense(z, w_d1, b_d1))       # (TB, P_H)
    a = act(dense(a, w_d2, b_d2))       # (TB, P_H)
    u = dense(a, w_d3, b_d3)            # (TB, P_U)  lane-dense

    u_ref[...] = u                      # full-128-lane unmasked store
    mean_ref[...] = mean                # tiny (L lanes) masked stores
    std_ref[...] = std


def _pack_weights(params, input_dim, latent_dim, hidden, P_H, P_U, P_2L):
    """Per-layer zero-padded bf16 weights (in,out) + f32 biases (1,out)."""

    def padw(w, rows, cols):
        fi, fo = w.shape
        return jnp.zeros((rows, cols), jnp.bfloat16).at[:fi, :fo].set(
            w.astype(jnp.bfloat16))

    def padb(b, cols):
        return jnp.zeros((1, cols), jnp.float32).at[0, :b.shape[0]].set(
            b.astype(jnp.float32))

    w_e1 = padw(params["e1"][0], input_dim, P_H)
    w_e2 = padw(params["e2"][0], P_H, P_H)
    w_d1 = padw(params["d1"][0], latent_dim, P_H)
    w_d2 = padw(params["d2"][0], P_H, P_H)
    w_d3 = padw(params["d3"][0], P_H, P_U)

    b_e1 = padb(params["e1"][1], P_H)
    b_e2 = padb(params["e2"][1], P_H)
    b_d1 = padb(params["d1"][1], P_H)
    b_d2 = padb(params["d2"][1], P_H)
    b_d3 = padb(params["d3"][1], P_U)

    # Fused head: mean -> lanes [0:L), log_std -> lanes [L:2L).
    wm, bm = params["mean"]
    ws, bs = params["log_std"]
    w_h = jnp.zeros((P_H, P_2L), jnp.bfloat16)
    w_h = w_h.at[:hidden, :latent_dim].set(wm.astype(jnp.bfloat16))
    w_h = w_h.at[:hidden, latent_dim:2 * latent_dim].set(ws.astype(jnp.bfloat16))
    b_h = jnp.zeros((1, P_2L), jnp.float32)
    b_h = b_h.at[0, :latent_dim].set(bm.astype(jnp.float32))
    b_h = b_h.at[0, latent_dim:2 * latent_dim].set(bs.astype(jnp.float32))

    return (w_e1, b_e1, w_e2, b_e2, w_h, b_h,
            w_d1, b_d1, w_d2, b_d2, w_d3, b_d3)


def vae_forward(x, eps, params, *, leaky=False):
    """params: dict name -> (weight (in,out), bias (out,)) in f32."""
    B, input_dim = x.shape
    latent_dim = eps.shape[1]
    hidden = params["e1"][0].shape[1]

    # Per-dimension padding: only output (lane) dims rounded to 128.
    P_H = _round_up(hidden, 128)
    P_U = _round_up(input_dim, 128)
    P_2L = _round_up(2 * latent_dim, 128)

    # Batch grid: large tiles, weights resident across grid steps.
    TILE_B = min(512, _round_up(B, 8))
    Bp = _round_up(B, TILE_B)
    grid = (Bp // TILE_B,)

    weights = _pack_weights(params, input_dim, latent_dim, hidden,
                            P_H, P_U, P_2L)

    xp = x if Bp == B else jnp.zeros((Bp, input_dim), jnp.float32).at[:B].set(x)
    ep = eps if Bp == B else jnp.zeros((Bp, latent_dim),
                                       jnp.float32).at[:B].set(eps)

    act_specs = [
        pl.BlockSpec((TILE_B, input_dim), lambda i: (i, 0)),
        pl.BlockSpec((TILE_B, latent_dim), lambda i: (i, 0)),
    ]
    # Constant index_map -> each weight/bias is DMA'd once and stays resident.
    w_specs = [pl.BlockSpec(w.shape, lambda i: (0, 0)) for w in weights]

    out_shape = (
        jax.ShapeDtypeStruct((Bp, P_U), jnp.float32),          # u (lane-dense)
        jax.ShapeDtypeStruct((Bp, latent_dim), jnp.float32),   # mean
        jax.ShapeDtypeStruct((Bp, latent_dim), jnp.float32),   # std
    )
    out_specs = (
        pl.BlockSpec((TILE_B, P_U), lambda i: (i, 0)),
        pl.BlockSpec((TILE_B, latent_dim), lambda i: (i, 0)),
        pl.BlockSpec((TILE_B, latent_dim), lambda i: (i, 0)),
    )

    # Cost estimate from the TRUE layer shapes (bf16 weight bytes).
    true_flops = 2 * Bp * (input_dim * hidden + hidden * hidden
                           + hidden * 2 * latent_dim + latent_dim * hidden
                           + hidden * hidden + hidden * input_dim)
    true_w_elems = (input_dim * hidden + 2 * hidden * hidden
                    + 2 * hidden * latent_dim + latent_dim * hidden
                    + hidden * input_dim)
    true_b_elems = 4 * hidden + 2 * latent_dim + input_dim
    bytes_accessed = (2 * true_w_elems + 4 * true_b_elems
                      + 4 * Bp * (input_dim + latent_dim)       # inputs
                      + 4 * Bp * (input_dim + 2 * latent_dim))  # outputs
    cost = pl.CostEstimate(flops=int(true_flops),
                           transcendentals=int(Bp * latent_dim),
                           bytes_accessed=int(bytes_accessed))

    # VMEM budget: resident weights + double-buffered in/out tiles + headroom.
    resident = sum(int(w.size) * w.dtype.itemsize for w in weights)
    per_step = 4 * TILE_B * (_round_up(input_dim, 128)
                             + _round_up(latent_dim, 128)
                             + P_U + 2 * _round_up(latent_dim, 128))
    vmem_limit = int(min(64 << 20,
                         max(2 * (resident + 2 * per_step) + (4 << 20),
                             16 << 20)))

    kernel = functools.partial(vae_kernel, latent_dim=latent_dim, leaky=leaky)
    u, mean, std = pl.pallas_call(
        kernel,
        grid=grid,
        in_specs=act_specs + w_specs,
        out_specs=out_specs,
        out_shape=out_shape,
        compiler_params=pltpu.CompilerParams(
            dimension_semantics=("parallel",),
            vmem_limit_bytes=vmem_limit),
        cost_estimate=cost,
    )(xp, ep, *weights)

    return u[:B, :input_dim], mean[:B], std[:B]


def vae_forward_ref(x, eps, params, *, leaky=False, weight_dtype=None):
    """Pure-JAX reference. weight_dtype=bf16 mimics the kernel's quantization."""

    def lin(h, name):
        w, b = params[name]
        if weight_dtype is not None:
            return (jnp.dot(h.astype(weight_dtype), w.astype(weight_dtype),
                            preferred_element_type=jnp.float32)
                    + b.astype(jnp.float32))
        return h @ w + b

    act = (lambda v: jnp.where(v > 0.0, v, 0.01 * v)) if leaky else jax.nn.relu
    h = act(lin(x, "e1"))
    h = act(lin(h, "e2"))
    mean = lin(h, "mean")
    log_std = jnp.clip(lin(h, "log_std"), -4.0, 15.0)
    std = jnp.exp(log_std)
    z = mean + std * eps
    a = act(lin(z, "d1"))
    a = act(lin(a, "d2"))
    u = lin(a, "d3")
    return u, mean, std


def init_params(key, input_dim, latent_dim, hidden_size):
    """Deterministic init. Weights stored as (in, out) (PyTorch (out,in) transposed)."""
    shapes = {
        "e1": (input_dim, hidden_size),
        "e2": (hidden_size, hidden_size),
        "mean": (hidden_size, latent_dim),
        "log_std": (hidden_size, latent_dim),
        "d1": (latent_dim, hidden_size),
        "d2": (hidden_size, hidden_size),
        "d3": (hidden_size, input_dim),
    }
    params = {}
    for i, (name, (fan_in, fan_out)) in enumerate(shapes.items()):
        kw, kb = jax.random.split(jax.random.fold_in(key, i))
        bound = 1.0 / jnp.sqrt(fan_in)
        w = jax.random.uniform(kw, (fan_in, fan_out), jnp.float32, -bound, bound)
        b = jax.random.uniform(kb, (fan_out,), jnp.float32, -bound, bound)
        params[name] = (w, b)
    return params


if __name__ == "__main__":
    batch = 8
    input_dim = 32
    latent_dim = 16
    hidden_size = 64

    key = jax.random.PRNGKey(0)
    k_param, k_x, k_eps = jax.random.split(key, 3)

    params = init_params(k_param, input_dim, latent_dim, hidden_size)
    x = jax.random.normal(k_x, (batch, input_dim), jnp.float32)
    # torch.randn_like(std) -> host-generated standard normal noise for
    # deterministic parity with the reference.
    eps = jax.random.normal(k_eps, (batch, latent_dim), jnp.float32)

    u, mean, std = jax.block_until_ready(vae_forward(x, eps, params))

    assert u.shape == (batch, input_dim)
    assert mean.shape == (batch, latent_dim)
    assert std.shape == (batch, latent_dim)

    # Tight check vs. a bf16-consistent reference (same quantization as kernel).
    u_q, mean_q, std_q = vae_forward_ref(x, eps, params,
                                         weight_dtype=jnp.bfloat16)
    assert jnp.allclose(u, u_q, atol=1e-2, rtol=1e-2)
    assert jnp.allclose(mean, mean_q, atol=1e-2, rtol=1e-2)
    assert jnp.allclose(std, std_q, atol=1e-2, rtol=1e-2)

    # Loose check vs. the original f32 module semantics (bf16 weight rounding).
    u_f, mean_f, std_f = vae_forward_ref(x, eps, params)
    assert jnp.allclose(u, u_f, atol=1e-1, rtol=1e-1)
    assert jnp.allclose(mean, mean_f, atol=1e-1, rtol=1e-1)
    assert jnp.allclose(std, std_f, atol=1e-1, rtol=1e-1)

    print("KERNEL_OK")
</pallas_src>

<mosaic_0001>
module attributes {stable_mosaic.version = 11 : i64} {
  func.func @vae_kernel(%arg0: i32, %arg1: memref<8x32xf32, #tpu.memory_space<vmem>>, %arg2: memref<8x16xf32, #tpu.memory_space<vmem>>, %arg3: memref<32x128xbf16, #tpu.memory_space<vmem>>, %arg4: memref<1x128xf32, #tpu.memory_space<vmem>>, %arg5: memref<128x128xbf16, #tpu.memory_space<vmem>>, %arg6: memref<1x128xf32, #tpu.memory_space<vmem>>, %arg7: memref<128x128xbf16, #tpu.memory_space<vmem>>, %arg8: memref<1x128xf32, #tpu.memory_space<vmem>>, %arg9: memref<16x128xbf16, #tpu.memory_space<vmem>>, %arg10: memref<1x128xf32, #tpu.memory_space<vmem>>, %arg11: memref<128x128xbf16, #tpu.memory_space<vmem>>, %arg12: memref<1x128xf32, #tpu.memory_space<vmem>>, %arg13: memref<128x128xbf16, #tpu.memory_space<vmem>>, %arg14: memref<1x128xf32, #tpu.memory_space<vmem>>, %arg15: memref<8x128xf32, #tpu.memory_space<vmem>>, %arg16: memref<8x16xf32, #tpu.memory_space<vmem>>, %arg17: memref<8x16xf32, #tpu.memory_space<vmem>>) attributes {dimension_semantics = [#tpu.dimension_semantics<parallel>], iteration_bounds = array<i64: 1>, scalar_prefetch = 0 : i64, scratch_operands = 0 : i64, tpu.core_type = #tpu.core_type<tc>, window_params = [{transform_indices = @transform_0, window_bounds = array<i64: 8, 32>}, {transform_indices = @transform_1, window_bounds = array<i64: 8, 16>}, {pipeline_mode = #tpu.pipeline_mode<synchronous>, transform_indices = @transform_2, window_bounds = array<i64: 32, 128>}, {pipeline_mode = #tpu.pipeline_mode<synchronous>, transform_indices = @transform_3, window_bounds = array<i64: 1, 128>}, {pipeline_mode = #tpu.pipeline_mode<synchronous>, transform_indices = @transform_4, window_bounds = array<i64: 128, 128>}, {pipeline_mode = #tpu.pipeline_mode<synchronous>, transform_indices = @transform_5, window_bounds = array<i64: 1, 128>}, {pipeline_mode = #tpu.pipeline_mode<synchronous>, transform_indices = @transform_6, window_bounds = array<i64: 128, 128>}, {pipeline_mode = #tpu.pipeline_mode<synchronous>, transform_indices = @transform_7, window_bounds = array<i64: 1, 128>}, {pipeline_mode = #tpu.pipeline_mode<synchronous>, transform_indices = @transform_8, window_bounds = array<i64: 16, 128>}, {pipeline_mode = #tpu.pipeline_mode<synchronous>, transform_indices = @transform_9, window_bounds = array<i64: 1, 128>}, {pipeline_mode = #tpu.pipeline_mode<synchronous>, transform_indices = @transform_10, window_bounds = array<i64: 128, 128>}, {pipeline_mode = #tpu.pipeline_mode<synchronous>, transform_indices = @transform_11, window_bounds = array<i64: 1, 128>}, {pipeline_mode = #tpu.pipeline_mode<synchronous>, transform_indices = @transform_12, window_bounds = array<i64: 128, 128>}, {pipeline_mode = #tpu.pipeline_mode<synchronous>, transform_indices = @transform_13, window_bounds = array<i64: 1, 128>}, {transform_indices = @transform_14, window_bounds = array<i64: 8, 128>}, {transform_indices = @transform_15, window_bounds = array<i64: 8, 16>}, {transform_indices = @transform_16, window_bounds = array<i64: 8, 16>}]} {
    %c0 = arith.constant 0 : index
    %c0_0 = arith.constant 0 : index
    %0 = vector.load %arg1[%c0, %c0_0] : memref<8x32xf32, #tpu.memory_space<vmem>>, vector<8x32xf32>
    %c0_1 = arith.constant 0 : index
    %c0_2 = arith.constant 0 : index
    %1 = vector.load %arg2[%c0_1, %c0_2] : memref<8x16xf32, #tpu.memory_space<vmem>>, vector<8x16xf32>
    %2 = arith.truncf %0 : vector<8x32xf32> to vector<8x32xbf16>
    %c0_3 = arith.constant 0 : index
    %c0_4 = arith.constant 0 : index
    %3 = vector.load %arg3[%c0_3, %c0_4] : memref<32x128xbf16, #tpu.memory_space<vmem>>, vector<32x128xbf16>
    %cst = arith.constant dense<0.000000e+00> : vector<8x128xf32>
    %4 = tpu.matmul %2, %3, %cst {dimension_numbers = #tpu.dot_dimension_numbers<[1], [0], [0], [1], [0, 0, 1, 1], [], []>} : vector<8x32xbf16>, vector<32x128xbf16>, vector<8x128xf32> -> vector<8x128xf32>
    %c0_5 = arith.constant 0 : index
    %c0_6 = arith.constant 0 : index
    %5 = vector.load %arg4[%c0_5, %c0_6] : memref<1x128xf32, #tpu.memory_space<vmem>>, vector<1x128xf32>
    %6 = vector.broadcast %5 : vector<1x128xf32> to vector<8x128xf32>
    %7 = arith.addf %4, %6 : vector<8x128xf32>
    %cst_7 = arith.constant 0.000000e+00 : f32
    %8 = vector.broadcast %cst_7 : f32 to vector<8x128xf32>
    %9 = arith.maximumf %7, %8 : vector<8x128xf32>
    %10 = arith.truncf %9 : vector<8x128xf32> to vector<8x128xbf16>
    %c0_8 = arith.constant 0 : index
    %c0_9 = arith.constant 0 : index
    %11 = vector.load %arg5[%c0_8, %c0_9] : memref<128x128xbf16, #tpu.memory_space<vmem>>, vector<128x128xbf16>
    %cst_10 = arith.constant dense<0.000000e+00> : vector<8x128xf32>
    %12 = tpu.matmul %10, %11, %cst_10 {dimension_numbers = #tpu.dot_dimension_numbers<[1], [0], [0], [1], [0, 0, 1, 1], [], []>} : vector<8x128xbf16>, vector<128x128xbf16>, vector<8x128xf32> -> vector<8x128xf32>
    %c0_11 = arith.constant 0 : index
    %c0_12 = arith.constant 0 : index
    %13 = vector.load %arg6[%c0_11, %c0_12] : memref<1x128xf32, #tpu.memory_space<vmem>>, vector<1x128xf32>
    %14 = vector.broadcast %13 : vector<1x128xf32> to vector<8x128xf32>
    %15 = arith.addf %12, %14 : vector<8x128xf32>
    %cst_13 = arith.constant 0.000000e+00 : f32
    %16 = vector.broadcast %cst_13 : f32 to vector<8x128xf32>
    %17 = arith.maximumf %15, %16 : vector<8x128xf32>
    %18 = arith.truncf %17 : vector<8x128xf32> to vector<8x128xbf16>
    %c0_14 = arith.constant 0 : index
    %c0_15 = arith.constant 0 : index
    %19 = vector.load %arg7[%c0_14, %c0_15] : memref<128x128xbf16, #tpu.memory_space<vmem>>, vector<128x128xbf16>
    %cst_16 = arith.constant dense<0.000000e+00> : vector<8x128xf32>
    %20 = tpu.matmul %18, %19, %cst_16 {dimension_numbers = #tpu.dot_dimension_numbers<[1], [0], [0], [1], [0, 0, 1, 1], [], []>} : vector<8x128xbf16>, vector<128x128xbf16>, vector<8x128xf32> -> vector<8x128xf32>
    %c0_17 = arith.constant 0 : index
    %c0_18 = arith.constant 0 : index
    %21 = vector.load %arg8[%c0_17, %c0_18] : memref<1x128xf32, #tpu.memory_space<vmem>>, vector<1x128xf32>
    %22 = vector.broadcast %21 : vector<1x128xf32> to vector<8x128xf32>
    %23 = arith.addf %20, %22 : vector<8x128xf32>
    %24 = vector.extract_strided_slice %23 {offsets = [0, 0], sizes = [8, 16], strides = [1, 1]} : vector<8x128xf32> to vector<8x16xf32>
    %25 = vector.extract_strided_slice %23 {offsets = [0, 16], sizes = [8, 16], strides = [1, 1]} : vector<8x128xf32> to vector<8x16xf32>
    %cst_19 = arith.constant -4.000000e+00 : f32
    %cst_20 = arith.constant 1.500000e+01 : f32
    %26 = vector.broadcast %cst_19 : f32 to vector<8x16xf32>
    %27 = arith.maximumf %26, %25 : vector<8x16xf32>
    %28 = vector.broadcast %cst_20 : f32 to vector<8x16xf32>
    %29 = arith.minimumf %28, %27 : vector<8x16xf32>
    %30 = math.exp %29 : vector<8x16xf32>
    %31 = arith.mulf %30, %1 : vector<8x16xf32>
    %32 = arith.addf %24, %31 : vector<8x16xf32>
    %33 = arith.truncf %32 : vector<8x16xf32> to vector<8x16xbf16>
    %c0_21 = arith.constant 0 : index
    %c0_22 = arith.constant 0 : index
    %34 = vector.load %arg9[%c0_21, %c0_22] : memref<16x128xbf16, #tpu.memory_space<vmem>>, vector<16x128xbf16>
    %cst_23 = arith.constant dense<0.000000e+00> : vector<8x128xf32>
    %35 = tpu.matmul %33, %34, %cst_23 {dimension_numbers = #tpu.dot_dimension_numbers<[1], [0], [0], [1], [0, 0, 1, 1], [], []>} : vector<8x16xbf16>, vector<16x128xbf16>, vector<8x128xf32> -> vector<8x128xf32>
    %c0_24 = arith.constant 0 : index
    %c0_25 = arith.constant 0 : index
    %36 = vector.load %arg10[%c0_24, %c0_25] : memref<1x128xf32, #tpu.memory_space<vmem>>, vector<1x128xf32>
    %37 = vector.broadcast %36 : vector<1x128xf32> to vector<8x128xf32>
    %38 = arith.addf %35, %37 : vector<8x128xf32>
    %cst_26 = arith.constant 0.000000e+00 : f32
    %39 = vector.broadcast %cst_26 : f32 to vector<8x128xf32>
    %40 = arith.maximumf %38, %39 : vector<8x128xf32>
    %41 = arith.truncf %40 : vector<8x128xf32> to vector<8x128xbf16>
    %c0_27 = arith.constant 0 : index
    %c0_28 = arith.constant 0 : index
    %42 = vector.load %arg11[%c0_27, %c0_28] : memref<128x128xbf16, #tpu.memory_space<vmem>>, vector<128x128xbf16>
    %cst_29 = arith.constant dense<0.000000e+00> : vector<8x128xf32>
    %43 = tpu.matmul %41, %42, %cst_29 {dimension_numbers = #tpu.dot_dimension_numbers<[1], [0], [0], [1], [0, 0, 1, 1], [], []>} : vector<8x128xbf16>, vector<128x128xbf16>, vector<8x128xf32> -> vector<8x128xf32>
    %c0_30 = arith.constant 0 : index
    %c0_31 = arith.constant 0 : index
    %44 = vector.load %arg12[%c0_30, %c0_31] : memref<1x128xf32, #tpu.memory_space<vmem>>, vector<1x128xf32>
    %45 = vector.broadcast %44 : vector<1x128xf32> to vector<8x128xf32>
    %46 = arith.addf %43, %45 : vector<8x128xf32>
    %cst_32 = arith.constant 0.000000e+00 : f32
    %47 = vector.broadcast %cst_32 : f32 to vector<8x128xf32>
    %48 = arith.maximumf %46, %47 : vector<8x128xf32>
    %49 = arith.truncf %48 : vector<8x128xf32> to vector<8x128xbf16>
    %c0_33 = arith.constant 0 : index
    %c0_34 = arith.constant 0 : index
    %50 = vector.load %arg13[%c0_33, %c0_34] : memref<128x128xbf16, #tpu.memory_space<vmem>>, vector<128x128xbf16>
    %cst_35 = arith.constant dense<0.000000e+00> : vector<8x128xf32>
    %51 = tpu.matmul %49, %50, %cst_35 {dimension_numbers = #tpu.dot_dimension_numbers<[1], [0], [0], [1], [0, 0, 1, 1], [], []>} : vector<8x128xbf16>, vector<128x128xbf16>, vector<8x128xf32> -> vector<8x128xf32>
    %c0_36 = arith.constant 0 : index
    %c0_37 = arith.constant 0 : index
    %52 = vector.load %arg14[%c0_36, %c0_37] : memref<1x128xf32, #tpu.memory_space<vmem>>, vector<1x128xf32>
    %53 = vector.broadcast %52 : vector<1x128xf32> to vector<8x128xf32>
    %54 = arith.addf %51, %53 : vector<8x128xf32>
    %c0_38 = arith.constant 0 : index
    %c0_39 = arith.constant 0 : index
    %55 = vector.load %arg15[%c0_38, %c0_39] : memref<8x128xf32, #tpu.memory_space<vmem>>, vector<8x128xf32>
    tpu.vector_store %arg15[%c0_38, %c0_39], %54 {strides = array<i32>} : memref<8x128xf32, #tpu.memory_space<vmem>>, vector<8x128xf32>,
    %c0_40 = arith.constant 0 : index
    %c0_41 = arith.constant 0 : index
    %56 = vector.load %arg16[%c0_40, %c0_41] : memref<8x16xf32, #tpu.memory_space<vmem>>, vector<8x16xf32>
    tpu.vector_store %arg16[%c0_40, %c0_41], %24 {strides = array<i32>} : memref<8x16xf32, #tpu.memory_space<vmem>>, vector<8x16xf32>,
    %c0_42 = arith.constant 0 : index
    %c0_43 = arith.constant 0 : index
    %57 = vector.load %arg17[%c0_42, %c0_43] : memref<8x16xf32, #tpu.memory_space<vmem>>, vector<8x16xf32>
    tpu.vector_store %arg17[%c0_42, %c0_43], %30 {strides = array<i32>} : memref<8x16xf32, #tpu.memory_space<vmem>>, vector<8x16xf32>,
    return
  }
  func.func @transform_0(%arg0: i32) -> (i32, i32) {
    %c0_i32 = arith.constant 0 : i32
    %c0_i32_0 = arith.constant 0 : i32
    return %arg0, %c0_i32 : i32, i32
  }
  func.func @transform_1(%arg0: i32) -> (i32, i32) {
    %c0_i32 = arith.constant 0 : i32
    %c0_i32_0 = arith.constant 0 : i32
    return %arg0, %c0_i32 : i32, i32
  }
  func.func @transform_2(%arg0: i32) -> (i32, i32) {
    %c0_i32 = arith.constant 0 : i32
    %c0_i32_0 = arith.constant 0 : i32
    %c0_i32_1 = arith.constant 0 : i32
    return %c0_i32, %c0_i32_0 : i32, i32
  }
  func.func @transform_3(%arg0: i32) -> (i32, i32) {
    %c0_i32 = arith.constant 0 : i32
    %c0_i32_0 = arith.constant 0 : i32
    %c0_i32_1 = arith.constant 0 : i32
    return %c0_i32, %c0_i32_0 : i32, i32
  }
  func.func @transform_4(%arg0: i32) -> (i32, i32) {
    %c0_i32 = arith.constant 0 : i32
    %c0_i32_0 = arith.constant 0 : i32
    %c0_i32_1 = arith.constant 0 : i32
    return %c0_i32, %c0_i32_0 : i32, i32
  }
  func.func @transform_5(%arg0: i32) -> (i32, i32) {
    %c0_i32 = arith.constant 0 : i32
    %c0_i32_0 = arith.constant 0 : i32
    %c0_i32_1 = arith.constant 0 : i32
    return %c0_i32, %c0_i32_0 : i32, i32
  }
  func.func @transform_6(%arg0: i32) -> (i32, i32) {
    %c0_i32 = arith.constant 0 : i32
    %c0_i32_0 = arith.constant 0 : i32
    %c0_i32_1 = arith.constant 0 : i32
    return %c0_i32, %c0_i32_0 : i32, i32
  }
  func.func @transform_7(%arg0: i32) -> (i32, i32) {
    %c0_i32 = arith.constant 0 : i32
    %c0_i32_0 = arith.constant 0 : i32
    %c0_i32_1 = arith.constant 0 : i32
    return %c0_i32, %c0_i32_0 : i32, i32
  }
  func.func @transform_8(%arg0: i32) -> (i32, i32) {
    %c0_i32 = arith.constant 0 : i32
    %c0_i32_0 = arith.constant 0 : i32
    %c0_i32_1 = arith.constant 0 : i32
    return %c0_i32, %c0_i32_0 : i32, i32
  }
  func.func @transform_9(%arg0: i32) -> (i32, i32) {
    %c0_i32 = arith.constant 0 : i32
    %c0_i32_0 = arith.constant 0 : i32
    %c0_i32_1 = arith.constant 0 : i32
    return %c0_i32, %c0_i32_0 : i32, i32
  }
  func.func @transform_10(%arg0: i32) -> (i32, i32) {
    %c0_i32 = arith.constant 0 : i32
    %c0_i32_0 = arith.constant 0 : i32
    %c0_i32_1 = arith.constant 0 : i32
    return %c0_i32, %c0_i32_0 : i32, i32
  }
  func.func @transform_11(%arg0: i32) -> (i32, i32) {
    %c0_i32 = arith.constant 0 : i32
    %c0_i32_0 = arith.constant 0 : i32
    %c0_i32_1 = arith.constant 0 : i32
    return %c0_i32, %c0_i32_0 : i32, i32
  }
  func.func @transform_12(%arg0: i32) -> (i32, i32) {
    %c0_i32 = arith.constant 0 : i32
    %c0_i32_0 = arith.constant 0 : i32
    %c0_i32_1 = arith.constant 0 : i32
    return %c0_i32, %c0_i32_0 : i32, i32
  }
  func.func @transform_13(%arg0: i32) -> (i32, i32) {
    %c0_i32 = arith.constant 0 : i32
    %c0_i32_0 = arith.constant 0 : i32
    %c0_i32_1 = arith.constant 0 : i32
    return %c0_i32, %c0_i32_0 : i32, i32
  }
  func.func @transform_14(%arg0: i32) -> (i32, i32) {
    %c0_i32 = arith.constant 0 : i32
    %c0_i32_0 = arith.constant 0 : i32
    return %arg0, %c0_i32 : i32, i32
  }
  func.func @transform_15(%arg0: i32) -> (i32, i32) {
    %c0_i32 = arith.constant 0 : i32
    %c0_i32_0 = arith.constant 0 : i32
    return %arg0, %c0_i32 : i32, i32
  }
  func.func @transform_16(%arg0: i32) -> (i32, i32) {
    %c0_i32 = arith.constant 0 : i32
    %c0_i32_0 = arith.constant 0 : i32
    return %arg0, %c0_i32 : i32, i32
  }
}

</mosaic_0001>

<llo_original>
// kernel: tpu_custom_call.1
$region0: #{tpu_custom_call.1}
  #allocation0 [shape = 'u32[]', space=smem, size = 0x4, offset = 0x4, fixed_abs, tag = 'smem constant byte address 0x4 - core index']
  #allocation1 [shape = 'u32[72,128]{1,0:T(1,128)}', space=vmem, size = 0x9000, scoped, tag = 'internal scratch']
  %s0 = inlined_call_operand.hbm [shape: f32[8,32], index: 0, kind: input, shape index: {}]
  %s1 = inlined_call_operand.hbm [shape: f32[8,16], index: 1, kind: input, shape index: {}]
  %s2 = inlined_call_operand.hbm [shape: bf16[32,128], index: 2, kind: input, shape index: {}]
  %s3 = inlined_call_operand.vmem [shape: f32[1,128], index: 3, kind: input, shape index: {}]
  %s4 = inlined_call_operand.hbm [shape: bf16[128,128], index: 4, kind: input, shape index: {}]
  %s5 = inlined_call_operand.vmem [shape: f32[1,128], index: 5, kind: input, shape index: {}]
  %s6 = inlined_call_operand.hbm [shape: bf16[128,128], index: 6, kind: input, shape index: {}]
  %s7 = inlined_call_operand.vmem [shape: f32[1,128], index: 7, kind: input, shape index: {}]
  %s8 = inlined_call_operand.hbm [shape: bf16[16,128], index: 8, kind: input, shape index: {}]
  %s9 = inlined_call_operand.vmem [shape: f32[1,128], index: 9, kind: input, shape index: {}]
  %s10 = inlined_call_operand.hbm [shape: bf16[128,128], index: 10, kind: input, shape index: {}]
  %s11 = inlined_call_operand.vmem [shape: f32[1,128], index: 11, kind: input, shape index: {}]
  %s12 = inlined_call_operand.hbm [shape: bf16[128,128], index: 12, kind: input, shape index: {}]
  %s13 = inlined_call_operand.vmem [shape: f32[1,128], index: 13, kind: input, shape index: {}]
  %s14 = inlined_call_operand.hbm [shape: f32[8,128], index: 14, kind: output, shape index: {0}]
  %s15 = inlined_call_operand.hbm [shape: f32[8,16], index: 15, kind: output, shape index: {1}]
  %s16 = inlined_call_operand.hbm [shape: f32[8,16], index: 16, kind: output, shape index: {2}]
  %17 = xla_tuple %s14, %s15, %s16
  %s18 = sld [smem:[#allocation0]]
  $region114: #{tpu_custom_call.1} parent=0
    _
  %s20 = ssub.s32 1, %s18
  %s21 = scalar_select 0, %s20, %s18
  $region1: #{tpu_custom_call.1} parent=0
    #allocation2 [shape = 'u8[4096]{0}', space=vmem, size = 0x1000, scoped, tag = 'input window, operand 0, single buffered']
    #allocation3 [shape = 's32[1]{0}', space=sflag, size = 0x4, scoped, tag = 'scoped memory for tpu_custom_call.1']
    #allocation4 [shape = 's32[1]{0}', space=sflag, size = 0x4, scoped, tag = 'scoped memory for tpu_custom_call.1']
    #allocation5 [shape = 'u8[4096]{0}', space=vmem, size = 0x1000, scoped, tag = 'input window, operand 1, single buffered']
    #allocation6 [shape = 's32[1]{0}', space=sflag, size = 0x4, scoped, tag = 'scoped memory for tpu_custom_call.1']
    #allocation7 [shape = 'u8[8192]{0}', space=vmem, size = 0x2000, scoped, tag = 'input window, operand 2, single buffered']
    #allocation8 [shape = 'u8[32768]{0}', space=vmem, size = 0x8000, scoped, tag = 'input window, operand 4, single buffered']
    #allocation9 [shape = 's32[1]{0}', space=sflag, size = 0x4, scoped, tag = 'scoped memory for tpu_custom_call.1']
    #allocation10 [shape = 'u8[32768]{0}', space=vmem, size = 0x8000, scoped, tag = 'input window, operand 6, single buffered']
    #allocation11 [shape = 'u8[4096]{0}', space=vmem, size = 0x1000, scoped, tag = 'input window, operand 8, single buffered']
    #allocation12 [shape = 's32[1]{0}', space=sflag, size = 0x4, scoped, tag = 'scoped memory for tpu_custom_call.1']
    #allocation13 [shape = 'u8[32768]{0}', space=vmem, size = 0x8000, scoped, tag = 'input window, operand 10, single buffered']
    #allocation14 [shape = 'u8[32768]{0}', space=vmem, size = 0x8000, scoped, tag = 'input window, operand 12, single buffered']
    #allocation15 [shape = 's32[1]{0}', space=sflag, size = 0x4, scoped, tag = 'scoped memory for tpu_custom_call.1']
    #allocation16 [shape = 'u8[4096]{0}', space=vmem, size = 0x1000, scoped, tag = 'output window, operand 0, single buffered']
    #allocation17 [shape = 'u8[4096]{0}', space=vmem, size = 0x1000, scoped, tag = 'output window, operand 1, single buffered']
    #allocation18 [shape = 's32[1]{0}', space=sflag, size = 0x4, scoped, tag = 'scoped memory for tpu_custom_call.1']
    #allocation19 [shape = 'u8[4096]{0}', space=vmem, size = 0x1000, scoped, tag = 'output window, operand 2, single buffered']
    %22 = vsyncpa [#allocation3], 0
    %23 = vsyncpa [#allocation6], 0
    %24 = vsyncpa [#allocation9], 0
    %25 = vsyncpa [#allocation12], 0
    %26 = vsyncpa [#allocation15], 0
    %27 = vsyncpa [#allocation4], 0
    %28 = vsyncpa [#allocation18], 0
    // Predicated region
    $region2: #{tpu_custom_call.1} parent=1 // pred_check
      _
    $region3: #{tpu_custom_call.1} parent=1 // pred_check_branch
      %30 = sbr.rel (0) target = $region5
    $region4: #{tpu_custom_call.1} parent=1 // pred_region
      %32 = vsyncadd [#allocation3], 0
      %s34 = sshll.u32 %s0, 4
      %s35 = int_to_ptr.hbm [resolvable:$true] %s34
      %s36 = sshll.u32 [#allocation2], 4
      %s37 = int_to_ptr.vmem [resolvable:$true] %s36
      %39 = dma.hbm_to_vmem [thread:$0]  %s35, 128, %s37, [#allocation3]
    $region5: #{tpu_custom_call.1} parent=1 // pred_fallthru
      _
    // Predicated region
    $region6: #{tpu_custom_call.1} parent=1 // pred_check
      _
    $region7: #{tpu_custom_call.1} parent=1 // pred_check_branch
      %41 = sbr.rel (0) target = $region9
    $region8: #{tpu_custom_call.1} parent=1 // pred_region
      %43 = vsyncadd [#allocation6], 0
      %s45 = sshll.u32 %s1, 4
      %s46 = int_to_ptr.hbm [resolvable:$true] %s45
      %s47 = sshll.u32 [#allocation5], 4
      %s48 = int_to_ptr.vmem [resolvable:$true] %s47
      %50 = dma.hbm_to_vmem [thread:$0]  %s46, 128, %s48, [#allocation6]
    $region9: #{tpu_custom_call.1} parent=1 // pred_fallthru
      _
    // Predicated region
    $region10: #{tpu_custom_call.1} parent=1 // pred_check
      _
    $region11: #{tpu_custom_call.1} parent=1 // pred_check_branch
      %52 = sbr.rel (0) target = $region13
    $region12: #{tpu_custom_call.1} parent=1 // pred_region
      %54 = vsyncadd [#allocation6], 0
      %s55 = sshll.u32 %s2, 4
      %s56 = int_to_ptr.hbm [resolvable:$true] %s55
      %s57 = sshll.u32 [#allocation7], 4
      %s58 = int_to_ptr.vmem [resolvable:$true] %s57
      %63 = dma.hbm_to_vmem [thread:$0]  %s56, 256, %s58, [#allocation6], 64, 64, 4
    $region13: #{tpu_custom_call.1} parent=1 // pred_fallthru
      _
    // Predicated region
    $region14: #{tpu_custom_call.1} parent=1 // pred_check
      _
    $region15: #{tpu_custom_call.1} parent=1 // pred_check_branch
      %65 = sbr.rel (0) target = $region17
    $region16: #{tpu_custom_call.1} parent=1 // pred_region
      _
    $region17: #{tpu_custom_call.1} parent=1 // pred_fallthru
      _
    // Predicated region
    $region18: #{tpu_custom_call.1} parent=1 // pred_check
      _
    $region19: #{tpu_custom_call.1} parent=1 // pred_check_branch
      %67 = sbr.rel (0) target = $region21
    $region20: #{tpu_custom_call.1} parent=1 // pred_region
      %69 = vsyncadd [#allocation9], 0
      %s70 = sshll.u32 %s4, 4
      %s71 = int_to_ptr.hbm [resolvable:$true] %s70
      %s72 = sshll.u32 [#allocation8], 4
      %s73 = int_to_ptr.vmem [resolvable:$true] %s72
      %78 = dma.hbm_to_vmem [thread:$0]  %s71, 1024, %s73, [#allocation9], 64, 64, 4
    $region21: #{tpu_custom_call.1} parent=1 // pred_fallthru
      _
    // Predicated region
    $region22: #{tpu_custom_call.1} parent=1 // pred_check
      _
    $region23: #{tpu_custom_call.1} parent=1 // pred_check_branch
      %80 = sbr.rel (0) target = $region25
    $region24: #{tpu_custom_call.1} parent=1 // pred_region
      _
    $region25: #{tpu_custom_call.1} parent=1 // pred_fallthru
      _
    // Predicated region
    $region26: #{tpu_custom_call.1} parent=1 // pred_check
      _
    $region27: #{tpu_custom_call.1} parent=1 // pred_check_branch
      %82 = sbr.rel (0) target = $region29
    $region28: #{tpu_custom_call.1} parent=1 // pred_region
      %84 = vsyncadd [#allocation9], 0
      %s85 = sshll.u32 %s6, 4
      %s86 = int_to_ptr.hbm [resolvable:$true] %s85
      %s87 = sshll.u32 [#allocation10], 4
      %s88 = int_to_ptr.vmem [resolvable:$true] %s87
      %93 = dma.hbm_to_vmem [thread:$0]  %s86, 1024, %s88, [#allocation9], 64, 64, 4
    $region29: #{tpu_custom_call.1} parent=1 // pred_fallthru
      _
    // Predicated region
    $region30: #{tpu_custom_call.1} parent=1 // pred_check
      _
    $region31: #{tpu_custom_call.1} parent=1 // pred_check_branch
      %95 = sbr.rel (0) target = $region33
    $region32: #{tpu_custom_call.1} parent=1 // pred_region
      _
    $region33: #{tpu_custom_call.1} parent=1 // pred_fallthru
      _
    // Predicated region
    $region34: #{tpu_custom_call.1} parent=1 // pred_check
      _
    $region35: #{tpu_custom_call.1} parent=1 // pred_check_branch
      %97 = sbr.rel (0) target = $region37
    $region36: #{tpu_custom_call.1} parent=1 // pred_region
      %99 = vsyncadd [#allocation12], 0
      %s100 = sshll.u32 %s8, 4
      %s101 = int_to_ptr.hbm [resolvable:$true] %s100
      %s102 = sshll.u32 [#allocation11], 4
      %s103 = int_to_ptr.vmem [resolvable:$true] %s102
      %108 = dma.hbm_to_vmem [thread:$0]  %s101, 128, %s103, [#allocation12], 64, 64, 4
    $region37: #{tpu_custom_call.1} parent=1 // pred_fallthru
      _
    // Predicated region
    $region38: #{tpu_custom_call.1} parent=1 // pred_check
      _
    $region39: #{tpu_custom_call.1} parent=1 // pred_check_branch
      %110 = sbr.rel (0) target = $region41
    $region40: #{tpu_custom_call.1} parent=1 // pred_region
      _
    $region41: #{tpu_custom_call.1} parent=1 // pred_fallthru
      _
    // Predicated region
    $region42: #{tpu_custom_call.1} parent=1 // pred_check
      _
    $region43: #{tpu_custom_call.1} parent=1 // pred_check_branch
      %112 = sbr.rel (0) target = $region45
    $region44: #{tpu_custom_call.1} parent=1 // pred_region
      %114 = vsyncadd [#allocation12], 0
      %s115 = sshll.u32 %s10, 4
      %s116 = int_to_ptr.hbm [resolvable:$true] %s115
      %s117 = sshll.u32 [#allocation13], 4
      %s118 = int_to_ptr.vmem [resolvable:$true] %s117
      %123 = dma.hbm_to_vmem [thread:$0]  %s116, 1024, %s118, [#allocation12], 64, 64, 4
    $region45: #{tpu_custom_call.1} parent=1 // pred_fallthru
      _
    // Predicated region
    $region46: #{tpu_custom_call.1} parent=1 // pred_check
      _
    $region47: #{tpu_custom_call.1} parent=1 // pred_check_branch
      %125 = sbr.rel (0) target = $region49
    $region48: #{tpu_custom_call.1} parent=1 // pred_region
      _
    $region49: #{tpu_custom_call.1} parent=1 // pred_fallthru
      _
    // Predicated region
    $region50: #{tpu_custom_call.1} parent=1 // pred_check
      _
    $region51: #{tpu_custom_call.1} parent=1 // pred_check_branch
      %127 = sbr.rel (0) target = $region53
    $region52: #{tpu_custom_call.1} parent=1 // pred_region
      %129 = vsyncadd [#allocation15], 0
      %s130 = sshll.u32 %s12, 4
      %s131 = int_to_ptr.hbm [resolvable:$true] %s130
      %s132 = sshll.u32 [#allocation14], 4
      %s133 = int_to_ptr.vmem [resolvable:$true] %s132
      %138 = dma.hbm_to_vmem [thread:$0]  %s131, 1024, %s133, [#allocation15], 64, 64, 4
    $region53: #{tpu_custom_call.1} parent=1 // pred_fallthru
      _
    // Predicated region
    $region54: #{tpu_custom_call.1} parent=1 // pred_check
      _
    $region55: #{tpu_custom_call.1} parent=1 // pred_check_branch
      %140 = sbr.rel (0) target = $region57
    $region56: #{tpu_custom_call.1} parent=1 // pred_region
      _
    $region57: #{tpu_custom_call.1} parent=1 // pred_fallthru
      _
    // Predicated region
    $region58: #{tpu_custom_call.1} parent=1 // pred_check
      _
    $region59: #{tpu_custom_call.1} parent=1 // pred_check_branch
      %142 = sbr.rel (0) target = $region61
    $region60: #{tpu_custom_call.1} parent=1 // pred_region
      %144 = dma.done [#allocation3], 128
    $region61: #{tpu_custom_call.1} parent=1 // pred_fallthru
      _
    // Predicated region
    $region62: #{tpu_custom_call.1} parent=1 // pred_check
      _
    $region63: #{tpu_custom_call.1} parent=1 // pred_check_branch
      %146 = sbr.rel (0) target = $region65
    $region64: #{tpu_custom_call.1} parent=1 // pred_region
      %148 = dma.done [#allocation6], 128
    $region65: #{tpu_custom_call.1} parent=1 // pred_fallthru
      _
    // Predicated region
    $region66: #{tpu_custom_call.1} parent=1 // pred_check
      _
    $region67: #{tpu_custom_call.1} parent=1 // pred_check_branch
      %150 = sbr.rel (0) target = $region69
    $region68: #{tpu_custom_call.1} parent=1 // pred_region
      %152 = dma.done [#allocation6], 256
    $region69: #{tpu_custom_call.1} parent=1 // pred_fallthru
      _
    // Predicated region
    $region70: #{tpu_custom_call.1} parent=1 // pred_check
      _
    $region71: #{tpu_custom_call.1} parent=1 // pred_check_branch
      %154 = sbr.rel (0) target = $region73
    $region72: #{tpu_custom_call.1} parent=1 // pred_region
      %156 = dma.done [#allocation9], 1024
    $region73: #{tpu_custom_call.1} parent=1 // pred_fallthru
      _
    // Predicated region
    $region74: #{tpu_custom_call.1} parent=1 // pred_check
      _
    $region75: #{tpu_custom_call.1} parent=1 // pred_check_branch
      %158 = sbr.rel (0) target = $region77
    $region76: #{tpu_custom_call.1} parent=1 // pred_region
      %160 = dma.done [#allocation9], 1024
    $region77: #{tpu_custom_call.1} parent=1 // pred_fallthru
      _
    // Predicated region
    $region78: #{tpu_custom_call.1} parent=1 // pred_check
      _
    $region79: #{tpu_custom_call.1} parent=1 // pred_check_branch
      %162 = sbr.rel (0) target = $region81
    $region80: #{tpu_custom_call.1} parent=1 // pred_region
      %164 = dma.done [#allocation12], 128
    $region81: #{tpu_custom_call.1} parent=1 // pred_fallthru
      _
    // Predicated region
    $region82: #{tpu_custom_call.1} parent=1 // pred_check
      _
    $region83: #{tpu_custom_call.1} parent=1 // pred_check_branch
      %166 = sbr.rel (0) target = $region85
    $region84: #{tpu_custom_call.1} parent=1 // pred_region
      %168 = dma.done [#allocation12], 1024
    $region85: #{tpu_custom_call.1} parent=1 // pred_fallthru
      _
    // Predicated region
    $region86: #{tpu_custom_call.1} parent=1 // pred_check
      _
    $region87: #{tpu_custom_call.1} parent=1 // pred_check_branch
      %170 = sbr.rel (0) target = $region89
    $region88: #{tpu_custom_call.1} parent=1 // pred_region
      %172 = dma.done [#allocation15], 1024
    $region89: #{tpu_custom_call.1} parent=1 // pred_fallthru
      _
    %v174 = vld [vmem:[#allocation2] sm:$0xff]
    %v175 = vld [vmem:[#allocation5] sm:$0xff]
    %v176 = vpack.c.bf16 %v174, %v174
    %v177 = vld [vmem:[#allocation7] sm:$0xf]
    %v178 = vld [vmem:[#allocation7 + $0x4] sm:$0xf]
    %v179 = vld [vmem:[#allocation7 + $0x8] sm:$0xf]
    %v180 = vld [vmem:[#allocation7 + $0xc] sm:$0xf]
    %v181 = vld [vmem:[%s3] sm:$0x1]
    %v183 = vperm.slane %v181, 0
    %v189 = vunpack.c.l.b16 %v177
    %v190 = vunpack.c.l.b16 %v178
    %v191 = vunpack.c.l.b16 %v179
    %v192 = vunpack.c.l.b16 %v180
    %v193 = vpack.c.b16 %v190, %v189
    %v194 = vpack.c.b16 %v192, %v191
    %vm197 = vcmask 261120
    %v199 = vsel %vm197, %v176, 0
    %201 = vmatpush.bf16.msra.mxu0 0
    %202 = vmatpush.bf16.msra.mxu0 0
    %203 = vmatpush.bf16.msra.mxu0 0
    %204 = vmatpush.bf16.msra.mxu0 0
    %205 = vmatpush.bf16.msra.mxu0 0
    %206 = vmatpush.bf16.msra.mxu0 0
    %207 = vmatpush.bf16.msra.mxu0 %v194
    %208 = vmatpush.bf16.msra.mxu0 %v193
    %209 = vmatmul.bf16.gmra.mxu0 %v199
    %v210 = vpop.f32.mrf.mxu0
    %v211 = vadd.f32 %v183, %v210
    %v212 = vpop.f32.mrf.mxu0
    %213 = vdwg.mxu0
    %v214 = vmax.f32 %v211, 0.0
    %v215 = vpack.c.bf16 %v214, %v214
    %v216 = vld [vmem:[#allocation8] sm:$0xf]
    %v217 = vld [vmem:[#allocation8 + $0x4] sm:$0xf]
    %v218 = vld [vmem:[#allocation8 + $0x8] sm:$0xf]
    %v219 = vld [vmem:[#allocation8 + $0xc] sm:$0xf]
    %v220 = vld [vmem:[#allocation8 + $0x10] sm:$0xf]
    %v221 = vld [vmem:[#allocation8 + $0x14] sm:$0xf]
    %v222 = vld [vmem:[#allocation8 + $0x18] sm:$0xf]
    %v223 = vld [vmem:[#allocation8 + $0x1c] sm:$0xf]
    %v224 = vld [vmem:[#allocation8 + $0x20] sm:$0xf]
    %v225 = vld [vmem:[#allocation8 + $0x24] sm:$0xf]
    %v226 = vld [vmem:[#allocation8 + $0x28] sm:$0xf]
    %v227 = vld [vmem:[#allocation8 + $0x2c] sm:$0xf]
    %v228 = vld [vmem:[#allocation8 + $0x30] sm:$0xf]
    %v229 = vld [vmem:[#allocation8 + $0x34] sm:$0xf]
    %v230 = vld [vmem:[#allocation8 + $0x38] sm:$0xf]
    %v231 = vld [vmem:[#allocation8 + $0x3c] sm:$0xf]
    %v232 = vld [vmem:[%s5] sm:$0x1]
    %v234 = vperm.slane %v232, 0
    %v252 = vunpack.c.l.b16 %v216
    %v253 = vunpack.c.l.b16 %v217
    %v254 = vunpack.c.l.b16 %v218
    %v255 = vunpack.c.l.b16 %v219
    %v256 = vunpack.c.l.b16 %v220
    %v257 = vunpack.c.l.b16 %v221
    %v258 = vunpack.c.l.b16 %v222
    %v259 = vunpack.c.l.b16 %v223
    %v260 = vunpack.c.l.b16 %v224
    %v261 = vunpack.c.l.b16 %v225
    %v262 = vunpack.c.l.b16 %v226
    %v263 = vunpack.c.l.b16 %v227
    %v264 = vunpack.c.l.b16 %v228
    %v265 = vunpack.c.l.b16 %v229
    %v266 = vunpack.c.l.b16 %v230
    %v267 = vunpack.c.l.b16 %v231
    %v268 = vpack.c.b16 %v253, %v252
    %v269 = vpack.c.b16 %v255, %v254
    %v270 = vpack.c.b16 %v257, %v256
    %v271 = vpack.c.b16 %v259, %v258
    %v272 = vpack.c.b16 %v261, %v260
    %v273 = vpack.c.b16 %v263, %v262
    %v274 = vpack.c.b16 %v265, %v264
    %v275 = vpack.c.b16 %v267, %v266
    %284 = vmatpush.bf16.msra.mxu0 %v275
    %285 = vmatpush.bf16.msra.mxu0 %v274
    %286 = vmatpush.bf16.msra.mxu0 %v273
    %287 = vmatpush.bf16.msra.mxu0 %v272
    %288 = vmatpush.bf16.msra.mxu0 %v271
    %289 = vmatpush.bf16.msra.mxu0 %v270
    %290 = vmatpush.bf16.msra.mxu0 %v269
    %291 = vmatpush.bf16.msra.mxu0 %v268
    %292 = vmatmul.bf16.gmra.mxu0 %v215
    %v293 = vpop.f32.mrf.mxu0
    %v294 = vadd.f32 %v234, %v293
    %v295 = vpop.f32.mrf.mxu0
    %296 = vdwg.mxu0
    %v297 = vmax.f32 %v294, 0.0
    %v298 = vpack.c.bf16 %v297, %v297
    %v299 = vld [vmem:[#allocation10] sm:$0xf]
    %v300 = vld [vmem:[#allocation10 + $0x4] sm:$0xf]
    %v301 = vld [vmem:[#allocation10 + $0x8] sm:$0xf]
    %v302 = vld [vmem:[#allocation10 + $0xc] sm:$0xf]
    %v303 = vld [vmem:[#allocation10 + $0x10] sm:$0xf]
    %v304 = vld [vmem:[#allocation10 + $0x14] sm:$0xf]
    %v305 = vld [vmem:[#allocation10 + $0x18] sm:$0xf]
    %v306 = vld [vmem:[#allocation10 + $0x1c] sm:$0xf]
    %v307 = vld [vmem:[#allocation10 + $0x20] sm:$0xf]
    %v308 = vld [vmem:[#allocation10 + $0x24] sm:$0xf]
    %v309 = vld [vmem:[#allocation10 + $0x28] sm:$0xf]
    %v310 = vld [vmem:[#allocation10 + $0x2c] sm:$0xf]
    %v311 = vld [vmem:[#allocation10 + $0x30] sm:$0xf]
    %v312 = vld [vmem:[#allocation10 + $0x34] sm:$0xf]
    %v313 = vld [vmem:[#allocation10 + $0x38] sm:$0xf]
    %v314 = vld [vmem:[#allocation10 + $0x3c] sm:$0xf]
    %v315 = vld [vmem:[%s7] sm:$0x1]
    %v317 = vperm.slane %v315, 0
    %v335 = vunpack.c.l.b16 %v299
    %v336 = vunpack.c.l.b16 %v300
    %v337 = vunpack.c.l.b16 %v301
    %v338 = vunpack.c.l.b16 %v302
    %v339 = vunpack.c.l.b16 %v303
    %v340 = vunpack.c.l.b16 %v304
    %v341 = vunpack.c.l.b16 %v305
    %v342 = vunpack.c.l.b16 %v306
    %v343 = vunpack.c.l.b16 %v307
    %v344 = vunpack.c.l.b16 %v308
    %v345 = vunpack.c.l.b16 %v309
    %v346 = vunpack.c.l.b16 %v310
    %v347 = vunpack.c.l.b16 %v311
    %v348 = vunpack.c.l.b16 %v312
    %v349 = vunpack.c.l.b16 %v313
    %v350 = vunpack.c.l.b16 %v314
    %v351 = vpack.c.b16 %v336, %v335
    %v352 = vpack.c.b16 %v338, %v337
    %v353 = vpack.c.b16 %v340, %v339
    %v354 = vpack.c.b16 %v342, %v341
    %v355 = vpack.c.b16 %v344, %v343
    %v356 = vpack.c.b16 %v346, %v345
    %v357 = vpack.c.b16 %v348, %v347
    %v358 = vpack.c.b16 %v350, %v349
    %367 = vmatpush.bf16.msra.mxu0 %v358
    %368 = vmatpush.bf16.msra.mxu0 %v357
    %369 = vmatpush.bf16.msra.mxu0 %v356
    %370 = vmatpush.bf16.msra.mxu0 %v355
    %371 = vmatpush.bf16.msra.mxu0 %v354
    %372 = vmatpush.bf16.msra.mxu0 %v353
    %373 = vmatpush.bf16.msra.mxu0 %v352
    %374 = vmatpush.bf16.msra.mxu0 %v351
    %375 = vmatmul.bf16.gmra.mxu0 %v298
    %v376 = vpop.f32.mrf.mxu0
    %v377 = vadd.f32 %v317, %v376
    %v378 = vpop.f32.mrf.mxu0
    %379 = vdwg.mxu0
    %v380 = vmax.f32 %v377, -4.0
    %v381 = vmin.f32 %v380, 15.0
    %v382 = vmul.f32 %v381, 1.442695
    %v383 = vpow.pop %v382
    %385 = vrot.lane.b32.xlu0 %v175, 16
    %v386 = vpop.permute.xlu0 %385
    %v388 = vmul.f32 %v383, %v386
    %390 = vrot.lane.b32.xlu0 %v388, 112
    %v391 = vpop.permute.xlu0 %390
    %v393 = vadd.f32 %v377, %v391
    %v394 = vpack.c.bf16 %v393, %v393
    %v395 = vld [vmem:[#allocation11] sm:$0xf]
    %v396 = vld [vmem:[#allocation11 + $0x4] sm:$0xf]
    %v397 = vld [vmem:[%s9] sm:$0x1]
    %v399 = vperm.slane %v397, 0
    %v403 = vunpack.c.l.b16 %v395
    %v404 = vunpack.c.l.b16 %v396
    %v405 = vpack.c.b16 %v404, %v403
    %vm407 = vcmask 130048
    %v409 = vsel %vm407, %v394, 0
    %411 = vmatpush.bf16.msra.mxu0 0
    %412 = vmatpush.bf16.msra.mxu0 0
    %413 = vmatpush.bf16.msra.mxu0 0
    %414 = vmatpush.bf16.msra.mxu0 0
    %415 = vmatpush.bf16.msra.mxu0 0
    %416 = vmatpush.bf16.msra.mxu0 0
    %417 = vmatpush.bf16.msra.mxu0 0
    %418 = vmatpush.bf16.msra.mxu0 %v405
    %419 = vmatmul.bf16.gmra.mxu0 %v409
    %v420 = vpop.f32.mrf.mxu0
    %v421 = vadd.f32 %v399, %v420
    %v422 = vpop.f32.mrf.mxu0
    %423 = vdwg.mxu0
    %v424 = vmax.f32 %v421, 0.0
    %v425 = vpack.c.bf16 %v424, %v424
    %v426 = vld [vmem:[#allocation13] sm:$0xf]
    %v427 = vld [vmem:[#allocation13 + $0x4] sm:$0xf]
    %v428 = vld [vmem:[#allocation13 + $0x8] sm:$0xf]
    %v429 = vld [vmem:[#allocation13 + $0xc] sm:$0xf]
    %v430 = vld [vmem:[#allocation13 + $0x10] sm:$0xf]
    %v431 = vld [vmem:[#allocation13 + $0x14] sm:$0xf]
    %v432 = vld [vmem:[#allocation13 + $0x18] sm:$0xf]
    %v433 = vld [vmem:[#allocation13 + $0x1c] sm:$0xf]
    %v434 = vld [vmem:[#allocation13 + $0x20] sm:$0xf]
    %v435 = vld [vmem:[#allocation13 + $0x24] sm:$0xf]
    %v436 = vld [vmem:[#allocation13 + $0x28] sm:$0xf]
    %v437 = vld [vmem:[#allocation13 + $0x2c] sm:$0xf]
    %v438 = vld [vmem:[#allocation13 + $0x30] sm:$0xf]
    %v439 = vld [vmem:[#allocation13 + $0x34] sm:$0xf]
    %v440 = vld [vmem:[#allocation13 + $0x38] sm:$0xf]
    %v441 = vld [vmem:[#allocation13 + $0x3c] sm:$0xf]
    %v442 = vld [vmem:[%s11] sm:$0x1]
    %v444 = vperm.slane %v442, 0
    %v462 = vunpack.c.l.b16 %v426
    %v463 = vunpack.c.l.b16 %v427
    %v464 = vunpack.c.l.b16 %v428
    %v465 = vunpack.c.l.b16 %v429
    %v466 = vunpack.c.l.b16 %v430
    %v467 = vunpack.c.l.b16 %v431
    %v468 = vunpack.c.l.b16 %v432
    %v469 = vunpack.c.l.b16 %v433
    %v470 = vunpack.c.l.b16 %v434
    %v471 = vunpack.c.l.b16 %v435
    %v472 = vunpack.c.l.b16 %v436
    %v473 = vunpack.c.l.b16 %v437
    %v474 = vunpack.c.l.b16 %v438
    %v475 = vunpack.c.l.b16 %v439
    %v476 = vunpack.c.l.b16 %v440
    %v477 = vunpack.c.l.b16 %v441
    %v478 = vpack.c.b16 %v463, %v462
    %v479 = vpack.c.b16 %v465, %v464
    %v480 = vpack.c.b16 %v467, %v466
    %v481 = vpack.c.b16 %v469, %v468
    %v482 = vpack.c.b16 %v471, %v470
    %v483 = vpack.c.b16 %v473, %v472
    %v484 = vpack.c.b16 %v475, %v474
    %v485 = vpack.c.b16 %v477, %v476
    %494 = vmatpush.bf16.msra.mxu0 %v485
    %495 = vmatpush.bf16.msra.mxu0 %v484
    %496 = vmatpush.bf16.msra.mxu0 %v483
    %497 = vmatpush.bf16.msra.mxu0 %v482
    %498 = vmatpush.bf16.msra.mxu0 %v481
    %499 = vmatpush.bf16.msra.mxu0 %v480
    %500 = vmatpush.bf16.msra.mxu0 %v479
    %501 = vmatpush.bf16.msra.mxu0 %v478
    %502 = vmatmul.bf16.gmra.mxu0 %v425
    %v503 = vpop.f32.mrf.mxu0
    %v504 = vadd.f32 %v444, %v503
    %v505 = vpop.f32.mrf.mxu0
    %506 = vdwg.mxu0
    %v507 = vmax.f32 %v504, 0.0
    %v508 = vpack.c.bf16 %v507, %v507
    %v509 = vld [vmem:[#allocation14] sm:$0xf]
    %v510 = vld [vmem:[#allocation14 + $0x4] sm:$0xf]
    %v511 = vld [vmem:[#allocation14 + $0x8] sm:$0xf]
    %v512 = vld [vmem:[#allocation14 + $0xc] sm:$0xf]
    %v513 = vld [vmem:[#allocation14 + $0x10] sm:$0xf]
    %v514 = vld [vmem:[#allocation14 + $0x14] sm:$0xf]
    %v515 = vld [vmem:[#allocation14 + $0x18] sm:$0xf]
    %v516 = vld [vmem:[#allocation14 + $0x1c] sm:$0xf]
    %v517 = vld [vmem:[#allocation14 + $0x20] sm:$0xf]
    %v518 = vld [vmem:[#allocation14 + $0x24] sm:$0xf]
    %v519 = vld [vmem:[#allocation14 + $0x28] sm:$0xf]
    %v520 = vld [vmem:[#allocation14 + $0x2c] sm:$0xf]
    %v521 = vld [vmem:[#allocation14 + $0x30] sm:$0xf]
    %v522 = vld [vmem:[#allocation14 + $0x34] sm:$0xf]
    %v523 = vld [vmem:[#allocation14 + $0x38] sm:$0xf]
    %v524 = vld [vmem:[#allocation14 + $0x3c] sm:$0xf]
    %v525 = vld [vmem:[%s13] sm:$0x1]
    %v527 = vperm.slane %v525, 0
    %v545 = vunpack.c.l.b16 %v509
    %v546 = vunpack.c.l.b16 %v510
    %v547 = vunpack.c.l.b16 %v511
    %v548 = vunpack.c.l.b16 %v512
    %v549 = vunpack.c.l.b16 %v513
    %v550 = vunpack.c.l.b16 %v514
    %v551 = vunpack.c.l.b16 %v515
    %v552 = vunpack.c.l.b16 %v516
    %v553 = vunpack.c.l.b16 %v517
    %v554 = vunpack.c.l.b16 %v518
    %v555 = vunpack.c.l.b16 %v519
    %v556 = vunpack.c.l.b16 %v520
    %v557 = vunpack.c.l.b16 %v521
    %v558 = vunpack.c.l.b16 %v522
    %v559 = vunpack.c.l.b16 %v523
    %v560 = vunpack.c.l.b16 %v524
    %v561 = vpack.c.b16 %v546, %v545
    %v562 = vpack.c.b16 %v548, %v547
    %v563 = vpack.c.b16 %v550, %v549
    %v564 = vpack.c.b16 %v552, %v551
    %v565 = vpack.c.b16 %v554, %v553
    %v566 = vpack.c.b16 %v556, %v555
    %v567 = vpack.c.b16 %v558, %v557
    %v568 = vpack.c.b16 %v560, %v559
    %577 = vmatpush.bf16.msra.mxu0 %v568
    %578 = vmatpush.bf16.msra.mxu0 %v567
    %579 = vmatpush.bf16.msra.mxu0 %v566
    %580 = vmatpush.bf16.msra.mxu0 %v565
    %581 = vmatpush.bf16.msra.mxu0 %v564
    %582 = vmatpush.bf16.msra.mxu0 %v563
    %583 = vmatpush.bf16.msra.mxu0 %v562
    %584 = vmatpush.bf16.msra.mxu0 %v561
    %585 = vmatmul.bf16.gmra.mxu0 %v508
    %v586 = vpop.f32.mrf.mxu0
    %v587 = vadd.f32 %v527, %v586
    %v588 = vpop.f32.mrf.mxu0
    %589 = vdwg.mxu0
    %590 = vst [vmem:[#allocation16] sm:$0xff] %v587
    %591 = vst.msk [vmem:[#allocation17] sm:$0xff] %vm407, %v377
    %593 = vrot.lane.b32.xlu0 %v383, 112
    %v594 = vpop.permute.xlu0 %593
    %596 = vst.msk [vmem:[#allocation19] sm:$0xff] %vm407, %v594
    // Predicated region
    $region90: #{tpu_custom_call.1} parent=1 // pred_check
      _
    $region91: #{tpu_custom_call.1} parent=1 // pred_check_branch
      %598 = sbr.rel (0) target = $region93
    $region92: #{tpu_custom_call.1} parent=1 // pred_region
      %600 = vsyncadd [#allocation4], 0
      %s602 = sshll.u32 [#allocation16], 4
      %s603 = int_to_ptr.vmem [resolvable:$true] %s602
      %s604 = sshll.u32 %s14, 4
      %s605 = int_to_ptr.hbm [resolvable:$true] %s604
      %607 = dma.vmem_to_hbm [thread:$0]  %s603, 128, %s605, [#allocation4]
    $region93: #{tpu_custom_call.1} parent=1 // pred_fallthru
      _
    // Predicated region
    $region94: #{tpu_custom_call.1} parent=1 // pred_check
      _
    $region95: #{tpu_custom_call.1} parent=1 // pred_check_branch
      %609 = sbr.rel (0) target = $region97
    $region96: #{tpu_custom_call.1} parent=1 // pred_region
      %611 = vsyncadd [#allocation18], 0
      %s613 = sshll.u32 [#allocation17], 4
      %s614 = int_to_ptr.vmem [resolvable:$true] %s613
      %s615 = sshll.u32 %s15, 4
      %s616 = int_to_ptr.hbm [resolvable:$true] %s615
      %618 = dma.vmem_to_hbm [thread:$0]  %s614, 128, %s616, [#allocation18]
    $region97: #{tpu_custom_call.1} parent=1 // pred_fallthru
      _
    // Predicated region
    $region98: #{tpu_custom_call.1} parent=1 // pred_check
      _
    $region99: #{tpu_custom_call.1} parent=1 // pred_check_branch
      %620 = sbr.rel (0) target = $region101
    $region100: #{tpu_custom_call.1} parent=1 // pred_region
      %622 = vsyncadd [#allocation18], 0
      %s624 = sshll.u32 [#allocation19], 4
      %s625 = int_to_ptr.vmem [resolvable:$true] %s624
      %s626 = sshll.u32 %s16, 4
      %s627 = int_to_ptr.hbm [resolvable:$true] %s626
      %629 = dma.vmem_to_hbm [thread:$0]  %s625, 128, %s627, [#allocation18]
    $region101: #{tpu_custom_call.1} parent=1 // pred_fallthru
      _
    // Predicated region
    $region102: #{tpu_custom_call.1} parent=1 // pred_check
      _
    $region103: #{tpu_custom_call.1} parent=1 // pred_check_branch
      %631 = sbr.rel (0) target = $region105
    $region104: #{tpu_custom_call.1} parent=1 // pred_region
      %633 = dma.done [#allocation4], 128
    $region105: #{tpu_custom_call.1} parent=1 // pred_fallthru
      _
    // Predicated region
    $region106: #{tpu_custom_call.1} parent=1 // pred_check
      _
    $region107: #{tpu_custom_call.1} parent=1 // pred_check_branch
      %635 = sbr.rel (0) target = $region109
    $region108: #{tpu_custom_call.1} parent=1 // pred_region
      %637 = dma.done [#allocation18], 128
    $region109: #{tpu_custom_call.1} parent=1 // pred_fallthru
      _
    // Predicated region
    $region110: #{tpu_custom_call.1} parent=1 // pred_check
      _
    $region111: #{tpu_custom_call.1} parent=1 // pred_check_branch
      %639 = sbr.rel (0) target = $region113
    $region112: #{tpu_custom_call.1} parent=1 // pred_region
      %641 = dma.done [#allocation18], 128
    $region113: #{tpu_custom_call.1} parent=1 // pred_fallthru
      _
    %642 = vsyncpa [#allocation3], 1
    %643 = vsyncpa [#allocation6], 1
    %644 = vsyncpa [#allocation9], 1
    %645 = vsyncpa [#allocation12], 1
    %646 = vsyncpa [#allocation15], 1
    %647 = vsyncpa [#allocation4], 1
    %648 = vsyncpa [#allocation18], 1

</llo_original>
